<compile_context>
chip_gen: v7x
topology: tpu7x:2x2x1
jax: 0.10.0
libtpu: 0.0.40
codegen_flags: <defaults>
</compile_context>

<pallas_src>
import functools

import jax
import jax.numpy as jnp
from jax.experimental import pallas as pl
from jax.experimental.pallas import tpu as pltpu

_MAX_TILE = 512      # lane-dense (multiple of 128); VMEM-safe on v5e/v6e/v7x.
_UNROLL_LIMIT = 64   # unroll the select chain only for small bias tables.


def _rel_pos_bias_kernel(bias_ref, out_ref, *, max_rel_pos: int):
    """out[i, j] = bias[clip((j - i) + M, 0, 2M)] for this output tile.

    bias_ref: SMEM (2*M+1,) float32 table (scalar reads).
    out_ref:  VMEM (tile_i, tile_j) float32 output tile.
    """
    ti, tj = out_ref.shape
    # Global element offsets of this tile (scalar unit).
    i0 = pl.program_id(0) * ti
    j0 = pl.program_id(1) * tj

    # rel = clamp(j - i, -M, M) + M  ==  clip((j - i) + M, 0, 2M), in [0, 2M].
    row = jax.lax.broadcasted_iota(jnp.int32, (ti, tj), 0)
    col = jax.lax.broadcasted_iota(jnp.int32, (ti, tj), 1)
    shift = (j0 - i0) + max_rel_pos                       # scalar int32
    rel = jnp.clip((col - row) + shift, 0, 2 * max_rel_pos)

    n_entries = 2 * max_rel_pos + 1
    # Seed with bias[0]: the k == 0 case needs no compare/select of its own.
    acc = jnp.full((ti, tj), bias_ref[0], dtype=jnp.float32)
    if n_entries <= _UNROLL_LIMIT:
        for k in range(1, n_entries):                     # static unroll
            acc = jnp.where(rel == k, bias_ref[k], acc)
    else:
        def body(k, a):
            return jnp.where(rel == k, bias_ref[k], a)    # dynamic SMEM read
        acc = jax.lax.fori_loop(1, n_entries, body, acc)

    out_ref[...] = acc.astype(out_ref.dtype)


def relative_position_bias(x: jax.Array, bias: jax.Array, max_rel_pos: int) -> jax.Array:
    """JAX wrapper mirroring RelativePositionBias.forward.

    x:    (batch, seq, ...) — only seq (axis 1) matters.
    bias: (2*max_rel_pos + 1,) float32 parameter.
    returns: (seq, seq) float32.
    """
    seq_len = x.shape[1]
    n_entries = 2 * max_rel_pos + 1
    assert bias.shape == (n_entries,)

    # Full-extent block for small seq (always legal); 512x512 tiles otherwise.
    tile = seq_len if seq_len <= _MAX_TILE else _MAX_TILE
    grid = (pl.cdiv(seq_len, tile), pl.cdiv(seq_len, tile))

    kernel = functools.partial(_rel_pos_bias_kernel, max_rel_pos=max_rel_pos)

    cost = pl.CostEstimate(
        flops=(2 * n_entries + 6) * seq_len * seq_len,
        transcendentals=0,
        bytes_accessed=seq_len * seq_len * 4 + n_entries * 4,
    )

    return pl.pallas_call(
        kernel,
        out_shape=jax.ShapeDtypeStruct((seq_len, seq_len), jnp.float32),
        grid=grid,
        in_specs=[pl.BlockSpec(memory_space=pltpu.MemorySpace.SMEM)],
        out_specs=pl.BlockSpec((tile, tile), lambda i, j: (i, j)),
        compiler_params=pltpu.CompilerParams(
            dimension_semantics=("parallel", "parallel")),
        cost_estimate=cost,
    )(bias)


def _reference(x, bias, max_rel_pos):
    seq_len = x.shape[1]
    pos = jnp.arange(seq_len)
    rel = pos[None, :] - pos[:, None]
    rel = jnp.clip(rel, -max_rel_pos, max_rel_pos) + max_rel_pos
    return bias[rel]


if __name__ == "__main__":
    key = jax.random.PRNGKey(0)
    k_bias, k_x = jax.random.split(key)

    # Small demo shape consistent with the module: (batch, seq, hidden).
    max_rel_pos = 4
    batch, seq, hidden = 2, 8, 32

    bias = jax.random.uniform(k_bias, (2 * max_rel_pos + 1,), dtype=jnp.float32)
    x = jax.random.normal(k_x, (batch, seq, hidden), dtype=jnp.float32)

    out = relative_position_bias(x, bias, max_rel_pos)
    out = jax.block_until_ready(out)
    ref = _reference(x, bias, max_rel_pos)
    assert out.shape == (seq, seq)
    assert jnp.allclose(out, ref, atol=1e-6), "mismatch vs reference (seq=8)"

    # Second check: exercises the multi-tile grid path with a ragged edge.
    seq2 = 640
    x2 = jnp.zeros((1, seq2, 8), dtype=jnp.float32)
    out2 = jax.block_until_ready(relative_position_bias(x2, bias, max_rel_pos))
    ref2 = _reference(x2, bias, max_rel_pos)
    assert out2.shape == (seq2, seq2)
    assert jnp.allclose(out2, ref2, atol=1e-6), "mismatch vs reference (seq=640)"

    print("KERNEL_OK")
</pallas_src>

<mosaic_0001>
module attributes {stable_mosaic.version = 11 : i64} {
  func.func @_rel_pos_bias_kernel(%arg0: i32, %arg1: i32, %arg2: memref<9xf32, #tpu.memory_space<smem>>, %arg3: memref<8x8xf32, #tpu.memory_space<vmem>>) attributes {dimension_semantics = [#tpu.dimension_semantics<parallel>, #tpu.dimension_semantics<parallel>], iteration_bounds = array<i64: 1, 1>, scalar_prefetch = 0 : i64, scratch_operands = 0 : i64, tpu.core_type = #tpu.core_type<tc>, window_params = [{transform_indices = @transform_0, window_bounds = array<i64: 9>}, {transform_indices = @transform_1, window_bounds = array<i64: 8, 8>}]} {
    %c8_i32 = arith.constant 8 : i32
    %0 = arith.muli %arg0, %c8_i32 : i32
    %c8_i32_0 = arith.constant 8 : i32
    %1 = arith.muli %arg1, %c8_i32_0 : i32
    %2 = tpu.iota {dimensions = array<i32: 0>} : vector<8x8xi32>
    %3 = tpu.iota {dimensions = array<i32: 1>} : vector<8x8xi32>
    %4 = arith.subi %1, %0 : i32
    %c4_i32 = arith.constant 4 : i32
    %5 = arith.addi %4, %c4_i32 : i32
    %6 = arith.subi %3, %2 : vector<8x8xi32>
    %7 = vector.broadcast %5 : i32 to vector<8x8xi32>
    %8 = arith.addi %6, %7 : vector<8x8xi32>
    %c0_i32 = arith.constant 0 : i32
    %c8_i32_1 = arith.constant 8 : i32
    %9 = vector.broadcast %c0_i32 : i32 to vector<8x8xi32>
    %10 = arith.maxsi %9, %8 : vector<8x8xi32>
    %11 = vector.broadcast %c8_i32_1 : i32 to vector<8x8xi32>
    %12 = arith.minsi %11, %10 : vector<8x8xi32>
    %c0 = arith.constant 0 : index
    %13 = memref.load %arg2[%c0] : memref<9xf32, #tpu.memory_space<smem>>
    %14 = vector.broadcast %13 : f32 to vector<8x8xf32>
    %c1_i32 = arith.constant 1 : i32
    %15 = vector.broadcast %c1_i32 : i32 to vector<8x8xi32>
    %16 = arith.cmpi eq, %12, %15 : vector<8x8xi32>
    %c1 = arith.constant 1 : index
    %17 = memref.load %arg2[%c1] : memref<9xf32, #tpu.memory_space<smem>>
    %18 = vector.broadcast %17 : f32 to vector<8x8xf32>
    %19 = arith.select %16, %18, %14 : vector<8x8xi1>, vector<8x8xf32>
    %c2_i32 = arith.constant 2 : i32
    %20 = vector.broadcast %c2_i32 : i32 to vector<8x8xi32>
    %21 = arith.cmpi eq, %12, %20 : vector<8x8xi32>
    %c2 = arith.constant 2 : index
    %22 = memref.load %arg2[%c2] : memref<9xf32, #tpu.memory_space<smem>>
    %23 = vector.broadcast %22 : f32 to vector<8x8xf32>
    %24 = arith.select %21, %23, %19 : vector<8x8xi1>, vector<8x8xf32>
    %c3_i32 = arith.constant 3 : i32
    %25 = vector.broadcast %c3_i32 : i32 to vector<8x8xi32>
    %26 = arith.cmpi eq, %12, %25 : vector<8x8xi32>
    %c3 = arith.constant 3 : index
    %27 = memref.load %arg2[%c3] : memref<9xf32, #tpu.memory_space<smem>>
    %28 = vector.broadcast %27 : f32 to vector<8x8xf32>
    %29 = arith.select %26, %28, %24 : vector<8x8xi1>, vector<8x8xf32>
    %c4_i32_2 = arith.constant 4 : i32
    %30 = vector.broadcast %c4_i32_2 : i32 to vector<8x8xi32>
    %31 = arith.cmpi eq, %12, %30 : vector<8x8xi32>
    %c4 = arith.constant 4 : index
    %32 = memref.load %arg2[%c4] : memref<9xf32, #tpu.memory_space<smem>>
    %33 = vector.broadcast %32 : f32 to vector<8x8xf32>
    %34 = arith.select %31, %33, %29 : vector<8x8xi1>, vector<8x8xf32>
    %c5_i32 = arith.constant 5 : i32
    %35 = vector.broadcast %c5_i32 : i32 to vector<8x8xi32>
    %36 = arith.cmpi eq, %12, %35 : vector<8x8xi32>
    %c5 = arith.constant 5 : index
    %37 = memref.load %arg2[%c5] : memref<9xf32, #tpu.memory_space<smem>>
    %38 = vector.broadcast %37 : f32 to vector<8x8xf32>
    %39 = arith.select %36, %38, %34 : vector<8x8xi1>, vector<8x8xf32>
    %c6_i32 = arith.constant 6 : i32
    %40 = vector.broadcast %c6_i32 : i32 to vector<8x8xi32>
    %41 = arith.cmpi eq, %12, %40 : vector<8x8xi32>
    %c6 = arith.constant 6 : index
    %42 = memref.load %arg2[%c6] : memref<9xf32, #tpu.memory_space<smem>>
    %43 = vector.broadcast %42 : f32 to vector<8x8xf32>
    %44 = arith.select %41, %43, %39 : vector<8x8xi1>, vector<8x8xf32>
    %c7_i32 = arith.constant 7 : i32
    %45 = vector.broadcast %c7_i32 : i32 to vector<8x8xi32>
    %46 = arith.cmpi eq, %12, %45 : vector<8x8xi32>
    %c7 = arith.constant 7 : index
    %47 = memref.load %arg2[%c7] : memref<9xf32, #tpu.memory_space<smem>>
    %48 = vector.broadcast %47 : f32 to vector<8x8xf32>
    %49 = arith.select %46, %48, %44 : vector<8x8xi1>, vector<8x8xf32>
    %c8_i32_3 = arith.constant 8 : i32
    %50 = vector.broadcast %c8_i32_3 : i32 to vector<8x8xi32>
    %51 = arith.cmpi eq, %12, %50 : vector<8x8xi32>
    %c8 = arith.constant 8 : index
    %52 = memref.load %arg2[%c8] : memref<9xf32, #tpu.memory_space<smem>>
    %53 = vector.broadcast %52 : f32 to vector<8x8xf32>
    %54 = arith.select %51, %53, %49 : vector<8x8xi1>, vector<8x8xf32>
    %c0_4 = arith.constant 0 : index
    %c0_5 = arith.constant 0 : index
    %55 = vector.load %arg3[%c0_4, %c0_5] : memref<8x8xf32, #tpu.memory_space<vmem>>, vector<8x8xf32>
    tpu.vector_store %arg3[%c0_4, %c0_5], %54 {strides = array<i32>} : memref<8x8xf32, #tpu.memory_space<vmem>>, vector<8x8xf32>,
    return
  }
  func.func @transform_0(%arg0: i32, %arg1: i32) -> i32 {
    %c0_i32 = arith.constant 0 : i32
    %c0_i32_0 = arith.constant 0 : i32
    return %c0_i32 : i32
  }
  func.func @transform_1(%arg0: i32, %arg1: i32) -> (i32, i32) {
    %c0_i32 = arith.constant 0 : i32
    return %arg0, %arg1 : i32, i32
  }
}

</mosaic_0001>

<llo_original>
// kernel: tpu_custom_call.1
$region0: #{tpu_custom_call.1}
  #allocation0 [shape = 'u32[]', space=smem, size = 0x4, offset = 0x4, fixed_abs, tag = 'smem constant byte address 0x4 - core index']
  #allocation1 [shape = 'u32[144,128]{1,0:T(1,128)}', space=vmem, size = 0x12000, scoped, tag = 'internal scratch']
  %s0 = inlined_call_operand.hbm [shape: f32[9], index: 0, kind: input, shape index: {}]
  %s1 = inlined_call_operand.hbm [shape: f32[8,8], index: 1, kind: output, shape index: {}]
  %s2 = sld [smem:[#allocation0]]
  $region18: #{tpu_custom_call.1} parent=0
    _
  %s4 = ssub.s32 1, %s2
  %s5 = scalar_select 0, %s4, %s2
  $region1: #{tpu_custom_call.1} parent=0
    #allocation2 [shape = 'u8[512]{0}', space=smem, size = 0x200, scoped, tag = 'input window, operand 0, single buffered']
    #allocation3 [shape = 's32[1]{0}', space=sflag, size = 0x4, scoped, tag = 'scoped memory for tpu_custom_call.1']
    #allocation4 [shape = 's32[1]{0}', space=sflag, size = 0x4, scoped, tag = 'scoped memory for tpu_custom_call.1']
    #allocation5 [shape = 'u8[4096]{0}', space=vmem, size = 0x1000, scoped, tag = 'output window, operand 0, single buffered']
    %6 = vsyncpa [#allocation4], 0
    %7 = vsyncpa [#allocation3], 0
    // Predicated region
    $region2: #{tpu_custom_call.1} parent=1 // pred_check
      _
    $region3: #{tpu_custom_call.1} parent=1 // pred_check_branch
      %9 = sbr.rel (0) target = $region5
    $region4: #{tpu_custom_call.1} parent=1 // pred_region
      %s11 = ssub.s32 16, 16
      %12 = vsyncadd [#allocation4], %s11
      %15 = dma.hbm_to_smem %s0, 16, [#allocation2], [#allocation4]
    $region5: #{tpu_custom_call.1} parent=1 // pred_fallthru
      _
    // Predicated region
    $region6: #{tpu_custom_call.1} parent=1 // pred_check
      _
    $region7: #{tpu_custom_call.1} parent=1 // pred_check_branch
      %17 = sbr.rel (0) target = $region9
    $region8: #{tpu_custom_call.1} parent=1 // pred_region
      %18 = dma.done [#allocation4], 16
    $region9: #{tpu_custom_call.1} parent=1 // pred_fallthru
      _
    %19 = sfence
    %s20 = smul.u32 0, 8
    %s21 = smul.u32 0, 8
    %v22 = vlaneseq
    %v23 = vshrl.u32 %v22, 7
    %v24 = vlaneseq
    %v25 = vand.u32 %v24, 127
    %s26 = ssub.s32 %s21, %s20
    %s27 = sadd.s32 %s26, 4
    %v28 = vsub.s32 %v25, %v23
    %v29 = vstv %s27
    %v30 = vadd.s32 %v28, %v29
    %vm31 = vcmp.gt.s32.totalorder %v30, 0
    %v32 = vsel %vm31, %v30, 0
    %vm33 = vcmp.lt.s32.totalorder %v32, 8
    %v34 = vsel %vm33, %v32, 8
    %s35 = sld [smem:[#allocation2]]
    %v36 = vstv %s35
    %vm37 = vcmp.eq.s32.totalorder %v34, 1
    %s38 = sld [smem:[#allocation2 + $0x1]]
    %v39 = vstv %s38
    %v40 = vsel %vm37, %v39, %v36
    %vm41 = vcmp.eq.s32.totalorder %v34, 2
    %s42 = sld [smem:[#allocation2 + $0x2]]
    %v43 = vstv %s42
    %v44 = vsel %vm41, %v43, %v40
    %vm45 = vcmp.eq.s32.totalorder %v34, 3
    %s46 = sld [smem:[#allocation2 + $0x3]]
    %v47 = vstv %s46
    %v48 = vsel %vm45, %v47, %v44
    %vm49 = vcmp.eq.s32.totalorder %v34, 4
    %s50 = sld [smem:[#allocation2 + $0x4]]
    %v51 = vstv %s50
    %v52 = vsel %vm49, %v51, %v48
    %vm53 = vcmp.eq.s32.totalorder %v34, 5
    %s54 = sld [smem:[#allocation2 + $0x5]]
    %v55 = vstv %s54
    %v56 = vsel %vm53, %v55, %v52
    %vm57 = vcmp.eq.s32.totalorder %v34, 6
    %s58 = sld [smem:[#allocation2 + $0x6]]
    %v59 = vstv %s58
    %v60 = vsel %vm57, %v59, %v56
    %vm61 = vcmp.eq.s32.totalorder %v34, 7
    %s62 = sld [smem:[#allocation2 + $0x7]]
    %v63 = vstv %s62
    %v64 = vsel %vm61, %v63, %v60
    %vm65 = vcmp.eq.s32.totalorder %v34, 8
    %s66 = sld [smem:[#allocation2 + $0x8]]
    %v67 = vstv %s66
    %v68 = vsel %vm65, %v67, %v64
    %vm69 = vcmask 64512
    %70 = vst.msk [vmem:[#allocation5] sm:$0xff] %vm69, %v68
    // Predicated region
    $region10: #{tpu_custom_call.1} parent=1 // pred_check
      _
    $region11: #{tpu_custom_call.1} parent=1 // pred_check_branch
      %72 = sbr.rel (0) target = $region13
    $region12: #{tpu_custom_call.1} parent=1 // pred_region
      %s74 = ssub.s32 128, 128
      %75 = vsyncadd [#allocation3], %s74
      %s77 = sshll.u32 [#allocation5], 4
      %s78 = int_to_ptr.vmem [resolvable:$true] %s77
      %80 = dma.vmem_to_hbm [thread:$0]  %s78, 128, %s1, [#allocation3]
    $region13: #{tpu_custom_call.1} parent=1 // pred_fallthru
      _
    // Predicated region
    $region14: #{tpu_custom_call.1} parent=1 // pred_check
      _
    $region15: #{tpu_custom_call.1} parent=1 // pred_check_branch
      %82 = sbr.rel (0) target = $region17
    $region16: #{tpu_custom_call.1} parent=1 // pred_region
      %83 = dma.done [#allocation3], 128
    $region17: #{tpu_custom_call.1} parent=1 // pred_fallthru
      _
    %84 = vsyncpa [#allocation3], 1
    %85 = vsyncpa [#allocation4], 1

</llo_original>
